<compile_context>
chip_gen: v7x
topology: tpu7x:2x2x1
jax: 0.10.0
libtpu: 0.0.40
codegen_flags: <defaults>
</compile_context>

<pallas_src>
import functools

import jax
import jax.numpy as jnp
from jax.experimental import pallas as pl
from jax.experimental.pallas import tpu as pltpu


# ---------------------------------------------------------------------------
# Kernel body
# ---------------------------------------------------------------------------

def _spectrum_kernel(x_ref, cwsw_ref, chsh_ref, o_ref, *, nonlin):
    b, hp, wp = x_ref.shape          # padded block: b images of (hp, wp)
    cdt = cwsw_ref.dtype             # MXU operand dtype (f32 or bf16)

    # Stage 1 (W-DFT): one slab matmul over all images in the block.
    # (b, hp, wp) -> (b*hp, wp) is layout-free because hp % 8 == 0, wp % 128 == 0.
    x2d = x_ref[...].reshape(b * hp, wp).astype(cdt)
    y1 = jnp.dot(x2d, cwsw_ref[...],
                 preferred_element_type=jnp.float32)          # (b*hp, 2*wp)
    y1 = y1.reshape(b, hp, 2 * wp).astype(cdt)                # [X@CW | X@SW]

    # Stage 2 (H-DFT): batched matmul with a shared CHSH left operand.
    # 'bqk,bkd->bqd' is the canonical Mosaic batched-matmul pattern; per image
    # M = 2*hp, K = hp, N = 2*wp, so the wide MXU output dim stays filled.
    chsh_b = jnp.broadcast_to(chsh_ref[...], (b, 2 * hp, hp))
    z = jnp.einsum("bqk,bkd->bqd", chsh_b, y1,
                   preferred_element_type=jnp.float32)        # (b, 2*hp, 2*wp)

    # Tile-aligned sub-slices (hp % 8 == 0, wp % 128 == 0).
    re = z[:, :hp, :wp] - z[:, hp:, wp:]
    imn = z[:, hp:, :wp] + z[:, :hp, wp:]        # = -Im; sign irrelevant for |.|
    mag = jnp.sqrt(re * re + imn * imn)          # (b, hp, wp), f32

    if nonlin == "logplus1":
        out = jnp.log1p(mag)
    elif nonlin == "sqrt":
        out = jnp.sqrt(mag)
    else:                                        # nonlin is None
        out = mag

    o_ref[...] = out.astype(o_ref.dtype)


# ---------------------------------------------------------------------------
# Host-side helpers
# ---------------------------------------------------------------------------

def _round_up(x, m):
    return ((x + m - 1) // m) * m


def _cdiv(a, b):
    return -(-a // b)


def _vmem_capacity_bytes():
    """Per-core VMEM capacity; conservative (v7x) default if unavailable."""
    try:
        cap = getattr(pltpu.get_tpu_info(), "vmem_capacity_bytes", None)
        if cap:
            return int(cap)
    except Exception:  # capability probe only; never masks kernel errors
        pass
    return 64 * 1024 * 1024


def _supports_buffered():
    """Narrow feature probe for BlockSpec(pipeline_mode=pl.Buffered(1))."""
    if not hasattr(pl, "Buffered"):
        return False
    try:
        pl.BlockSpec((8, 128), lambda i: (0, 0), pipeline_mode=pl.Buffered(1))
        return True
    except TypeError:
        return False


def _dft_matrices(h, hp, w, wp, dtype):
    """Zero-padded cos/sin DFT matrices; angles from (k*l mod n) integers."""

    def cos_sin(n, npad):
        k = jnp.arange(n, dtype=jnp.int32)
        # Reduce k*l mod n in integer arithmetic before converting to float so
        # the angle keeps full precision for large n (k*l reaches (n-1)^2).
        kl = (k[:, None] * k[None, :]) % n
        ang = kl.astype(jnp.float32) * jnp.float32(2.0 * jnp.pi / n)
        pad = ((0, npad - n), (0, npad - n))
        return jnp.pad(jnp.cos(ang), pad), jnp.pad(jnp.sin(ang), pad)

    cw, sw = cos_sin(w, wp)
    ch, sh = cos_sin(h, hp)
    cwsw = jnp.concatenate([cw, sw], axis=1).astype(dtype)    # (wp, 2*wp)
    chsh = jnp.concatenate([ch, sh], axis=0).astype(dtype)    # (2*hp, hp)
    return cwsw, chsh


def _pick_block_images(nc, hp, wp, x_bytes, c_bytes, o_bytes, vmem_cap):
    """Images per grid step, accounting for all per-step VMEM consumers."""
    per_img = (
        2 * hp * wp * x_bytes          # input block, double-buffered
        + 2 * hp * wp * o_bytes        # output block, double-buffered
        + hp * 2 * wp * 4              # y1 (f32 accumulate)
        + hp * 2 * wp * c_bytes        # y1 cast to MXU operand dtype
        + 2 * hp * hp * c_bytes        # broadcast CHSH operand
        + 2 * hp * 2 * wp * 4          # z (f32)
        + 4 * hp * wp * 4              # re / -im / mag / out temporaries
    )
    const = (wp * 2 * wp + 2 * hp * hp) * c_bytes   # single-buffered DFT mats
    budget = int(vmem_cap * 0.70) - const
    # TODO(synk): for very large W (CWSW approaching ~8-16 MiB on v7x) tile the
    # W-output dimension over an extra grid axis instead of shrinking b.
    b_cap = max(1, budget // per_img) if budget > per_img else 1

    # Enough rows / bytes per step to fill the stage-1 slab's MXU M-dim and
    # amortize the ~0.35us per-step pipeline overhead.
    b_target = max(_cdiv(512, hp),
                   _cdiv(4 << 20, hp * wp * (x_bytes + o_bytes)))
    b = max(1, min(b_cap, b_target, 256))

    # Keep >= 2 grid steps when there is more than one image so the 'parallel'
    # image axis can shard across the two TensorCores of a v7x chip
    # (negligible cost on single-core v5e/v6e).
    if nc > 1:
        b = min(b, _cdiv(nc, 2))
    return max(1, b)


def _spectrum_call(x_pad, cwsw, chsh, nonlin, b, hp, wp, out_dtype, vmem_cap):
    nc_pad = x_pad.shape[0]
    grid = (nc_pad // b,)

    if _supports_buffered():
        # Grid-invariant DFT matrices: a single VMEM buffer is enough.
        def const_spec(shape):
            return pl.BlockSpec(shape, lambda i: (0, 0),
                                pipeline_mode=pl.Buffered(1))
    else:
        def const_spec(shape):
            return pl.BlockSpec(shape, lambda i: (0, 0))

    x_bytes = x_pad.dtype.itemsize
    o_bytes = jnp.dtype(out_dtype).itemsize
    flops = nc_pad * (4 * hp * wp * wp + 8 * hp * hp * wp + 10 * hp * wp)
    transcendentals = nc_pad * hp * wp * 2
    bytes_accessed = (nc_pad * hp * wp * (x_bytes + o_bytes)
                      + cwsw.size * cwsw.dtype.itemsize
                      + chsh.size * chsh.dtype.itemsize)

    kernel = functools.partial(_spectrum_kernel, nonlin=nonlin)
    return pl.pallas_call(
        kernel,
        out_shape=jax.ShapeDtypeStruct((nc_pad, hp, wp), out_dtype),
        grid_spec=pltpu.PrefetchScalarGridSpec(
            num_scalar_prefetch=0,
            grid=grid,
            in_specs=[
                pl.BlockSpec((b, hp, wp), lambda i: (i, 0, 0)),   # images
                const_spec((wp, 2 * wp)),                          # CWSW
                const_spec((2 * hp, hp)),                          # CHSH
            ],
            out_specs=pl.BlockSpec((b, hp, wp), lambda i: (i, 0, 0)),
        ),
        compiler_params=pltpu.CompilerParams(
            dimension_semantics=("parallel",),
            vmem_limit_bytes=min(int(vmem_cap * 0.85), 112 * 1024 * 1024),
        ),
        cost_estimate=pl.CostEstimate(
            flops=int(flops),
            transcendentals=int(transcendentals),
            bytes_accessed=int(bytes_accessed),
        ),
    )(x_pad, cwsw, chsh)


# ---------------------------------------------------------------------------
# Public wrapper
# ---------------------------------------------------------------------------

def spectrum(x, nonlin="logplus1", *, block_images=None,
             matmul_dtype=jnp.float32, out_dtype=jnp.float32):
    """Pallas TPU implementation of Spectrum.forward.

    x: (N, C, H, W) real array.

    matmul_dtype=jnp.bfloat16 uses bf16 MXU operands with f32 accumulation
    (~3-4x MXU throughput on v6e/v7x, also helps v5e and halves input HBM
    traffic) at the cost of some accuracy on small spectral bins; float32
    (default) reproduces the PyTorch module.  out_dtype=jnp.bfloat16 halves
    output HBM traffic when the consumer tolerates it.
    """
    if nonlin not in (None, "logplus1", "sqrt"):
        raise ValueError(f"{nonlin}: unknown nonlinearity")

    N, C, H, W = x.shape
    nc = N * C
    hp = _round_up(H, 8)        # sublane alignment
    wp = _round_up(W, 128)      # lane alignment

    vmem_cap = _vmem_capacity_bytes()
    x_bytes = jnp.dtype(matmul_dtype).itemsize
    o_bytes = jnp.dtype(out_dtype).itemsize
    if block_images is None:
        block_images = _pick_block_images(nc, hp, wp, x_bytes, x_bytes,
                                          o_bytes, vmem_cap)
    b = max(1, int(block_images))
    nc_pad = _cdiv(nc, b) * b   # pad image count instead of forcing nc % b == 0

    x_flat = x.reshape(nc, H, W).astype(matmul_dtype)
    x_pad = jnp.pad(x_flat, ((0, nc_pad - nc), (0, hp - H), (0, wp - W)))
    cwsw, chsh = _dft_matrices(H, hp, W, wp, matmul_dtype)

    out_pad = _spectrum_call(x_pad, cwsw, chsh, nonlin, b, hp, wp,
                             out_dtype, vmem_cap)
    return out_pad[:nc, :H, :W].reshape(N, C, H, W)


def spectrum_ref(x, nonlin="logplus1"):
    """Pure-JAX reference (mirrors the PyTorch module)."""
    mag = jnp.abs(jnp.fft.fftn(x.astype(jnp.complex64), axes=(2, 3)))
    if nonlin is None:
        return mag
    if nonlin == "logplus1":
        return jnp.log1p(mag)
    if nonlin == "sqrt":
        return jnp.sqrt(mag)
    raise ValueError(nonlin)


if __name__ == "__main__":
    key = jax.random.PRNGKey(0)
    x = jax.random.normal(key, (2, 4, 16, 16), dtype=jnp.float32)

    # Exact path (f32 MXU operands): matches the PyTorch module semantics.
    ref = spectrum_ref(x, nonlin="logplus1")
    out = jax.block_until_ready(spectrum(x, nonlin="logplus1"))
    assert out.shape == (2, 4, 16, 16)
    err = float(jnp.max(jnp.abs(out - ref)))
    assert err < 1e-3, err

    # Unaligned shapes exercise the H / W / N*C zero-padding paths.
    x2 = jax.random.normal(jax.random.PRNGKey(1), (1, 3, 12, 20),
                           dtype=jnp.float32)
    ref2 = spectrum_ref(x2, nonlin="sqrt")
    out2 = jax.block_until_ready(spectrum(x2, nonlin="sqrt"))
    assert out2.shape == (1, 3, 12, 20)
    err2 = float(jnp.max(jnp.abs(out2 - ref2)))
    assert err2 < 1e-3, err2

    # Fast path for v5e/v6e/v7x: bf16 MXU operands, f32 accumulation.  Looser
    # bound — bf16 operand rounding costs up to ~1e-1 absolute in the spectrum.
    out_bf16 = jax.block_until_ready(
        spectrum(x, nonlin="logplus1", matmul_dtype=jnp.bfloat16))
    bf16_err = float(jnp.max(jnp.abs(out_bf16 - ref)))
    assert bf16_err < 0.75, bf16_err

    print("KERNEL_OK")
</pallas_src>

<mosaic_0001>
module attributes {stable_mosaic.version = 11 : i64} {
  func.func @_spectrum_kernel(%arg0: i32, %arg1: memref<4x16x128xf32, #tpu.memory_space<vmem>>, %arg2: memref<128x256xf32, #tpu.memory_space<vmem>>, %arg3: memref<32x16xf32, #tpu.memory_space<vmem>>, %arg4: memref<4x16x128xf32, #tpu.memory_space<vmem>>) attributes {dimension_semantics = [#tpu.dimension_semantics<parallel>], iteration_bounds = array<i64: 2>, scalar_prefetch = 0 : i64, scratch_operands = 0 : i64, tpu.core_type = #tpu.core_type<tc>, window_params = [{transform_indices = @transform_0, window_bounds = array<i64: 4, 16, 128>}, {pipeline_mode = #tpu.pipeline_mode<synchronous>, transform_indices = @transform_1, window_bounds = array<i64: 128, 256>}, {pipeline_mode = #tpu.pipeline_mode<synchronous>, transform_indices = @transform_2, window_bounds = array<i64: 32, 16>}, {transform_indices = @transform_3, window_bounds = array<i64: 4, 16, 128>}]} {
    %c0 = arith.constant 0 : index
    %c0_0 = arith.constant 0 : index
    %c0_1 = arith.constant 0 : index
    %0 = vector.load %arg1[%c0, %c0_0, %c0_1] : memref<4x16x128xf32, #tpu.memory_space<vmem>>, vector<4x16x128xf32>
    %1 = vector.shape_cast %0 : vector<4x16x128xf32> to vector<64x128xf32>
    %c0_2 = arith.constant 0 : index
    %c0_3 = arith.constant 0 : index
    %2 = vector.load %arg2[%c0_2, %c0_3] : memref<128x256xf32, #tpu.memory_space<vmem>>, vector<128x256xf32>
    %cst = arith.constant dense<0.000000e+00> : vector<64x256xf32>
    %3 = tpu.matmul %1, %2, %cst {dimension_numbers = #tpu.dot_dimension_numbers<[1], [0], [0], [1], [0, 0, 1, 1], [], []>} : vector<64x128xf32>, vector<128x256xf32>, vector<64x256xf32> -> vector<64x256xf32>
    %4 = vector.shape_cast %3 : vector<64x256xf32> to vector<4x16x256xf32>
    %c0_4 = arith.constant 0 : index
    %c0_5 = arith.constant 0 : index
    %5 = vector.load %arg3[%c0_4, %c0_5] : memref<32x16xf32, #tpu.memory_space<vmem>>, vector<32x16xf32>
    %6 = vector.shape_cast %5 : vector<32x16xf32> to vector<1x32x16xf32>
    %7 = vector.broadcast %6 : vector<1x32x16xf32> to vector<4x32x16xf32>
    "tpu.trace_start"() <{level = 10 : i32, message = "bqk,bkd->bqd"}> : () -> ()
    %cst_6 = arith.constant dense<0.000000e+00> : vector<4x32x256xf32>
    %8 = tpu.matmul %7, %4, %cst_6 {dimension_numbers = #tpu.dot_dimension_numbers<[2], [1], [1], [2], [0, 0, 0, 1, 1, 2], [0], [0]>} : vector<4x32x16xf32>, vector<4x16x256xf32>, vector<4x32x256xf32> -> vector<4x32x256xf32>
    "tpu.trace_stop"() : () -> ()
    %9 = vector.extract_strided_slice %8 {offsets = [0, 0, 0], sizes = [4, 16, 128], strides = [1, 1, 1]} : vector<4x32x256xf32> to vector<4x16x128xf32>
    %10 = vector.extract_strided_slice %8 {offsets = [0, 16, 128], sizes = [4, 16, 128], strides = [1, 1, 1]} : vector<4x32x256xf32> to vector<4x16x128xf32>
    %11 = arith.subf %9, %10 : vector<4x16x128xf32>
    %12 = vector.extract_strided_slice %8 {offsets = [0, 16, 0], sizes = [4, 16, 128], strides = [1, 1, 1]} : vector<4x32x256xf32> to vector<4x16x128xf32>
    %13 = vector.extract_strided_slice %8 {offsets = [0, 0, 128], sizes = [4, 16, 128], strides = [1, 1, 1]} : vector<4x32x256xf32> to vector<4x16x128xf32>
    %14 = arith.addf %12, %13 : vector<4x16x128xf32>
    %15 = arith.mulf %11, %11 : vector<4x16x128xf32>
    %16 = arith.mulf %14, %14 : vector<4x16x128xf32>
    %17 = arith.addf %15, %16 : vector<4x16x128xf32>
    %18 = math.sqrt %17 : vector<4x16x128xf32>
    %19 = math.log1p %18 : vector<4x16x128xf32>
    %c0_7 = arith.constant 0 : index
    %c0_8 = arith.constant 0 : index
    %c0_9 = arith.constant 0 : index
    %20 = vector.load %arg4[%c0_7, %c0_8, %c0_9] : memref<4x16x128xf32, #tpu.memory_space<vmem>>, vector<4x16x128xf32>
    tpu.vector_store %arg4[%c0_7, %c0_8, %c0_9], %19 {strides = array<i32>} : memref<4x16x128xf32, #tpu.memory_space<vmem>>, vector<4x16x128xf32>,
    return
  }
  func.func @transform_0(%arg0: i32) -> (i32, i32, i32) {
    %c0_i32 = arith.constant 0 : i32
    %c0_i32_0 = arith.constant 0 : i32
    %c0_i32_1 = arith.constant 0 : i32
    return %arg0, %c0_i32, %c0_i32_0 : i32, i32, i32
  }
  func.func @transform_1(%arg0: i32) -> (i32, i32) {
    %c0_i32 = arith.constant 0 : i32
    %c0_i32_0 = arith.constant 0 : i32
    %c0_i32_1 = arith.constant 0 : i32
    return %c0_i32, %c0_i32_0 : i32, i32
  }
  func.func @transform_2(%arg0: i32) -> (i32, i32) {
    %c0_i32 = arith.constant 0 : i32
    %c0_i32_0 = arith.constant 0 : i32
    %c0_i32_1 = arith.constant 0 : i32
    return %c0_i32, %c0_i32_0 : i32, i32
  }
  func.func @transform_3(%arg0: i32) -> (i32, i32, i32) {
    %c0_i32 = arith.constant 0 : i32
    %c0_i32_0 = arith.constant 0 : i32
    %c0_i32_1 = arith.constant 0 : i32
    return %arg0, %c0_i32, %c0_i32_0 : i32, i32, i32
  }
}

</mosaic_0001>

<llo_original>
// kernel: tpu_custom_call.1
$region0: #{tpu_custom_call.1}
  #allocation0 [shape = 'u32[]', space=smem, size = 0x4, offset = 0x4, fixed_abs, tag = 'smem constant byte address 0x4 - core index']
  #allocation1 [shape = 'u32[144,128]{1,0:T(1,128)}', space=vmem, size = 0x12000, scoped, tag = 'internal scratch']
  %s0 = inlined_call_operand.hbm [shape: f32[8,16,128], index: 0, kind: input, shape index: {}]
  %s1 = inlined_call_operand.hbm [shape: f32[128,256], index: 1, kind: input, shape index: {}]
  %s2 = inlined_call_operand.vmem [shape: f32[32,16], index: 2, kind: input, shape index: {}]
  %s3 = inlined_call_operand.hbm [shape: f32[8,16,128], index: 3, kind: output, shape index: {}]
  %s4 = sld [smem:[#allocation0]]
  $region53: #{tpu_custom_call.1} parent=0
    _
  %s6 = ssub.s32 1, %s4
  %s7 = scalar_select 0, %s6, %s4
  $region1: #{tpu_custom_call.1} parent=0
    #allocation2 [shape = 'u8[65536]{0}', space=vmem, size = 0x10000, scoped, tag = 'input window, operand 0']
    #allocation3 [shape = 's32[2]{0}', space=sflag, size = 0x8, scoped, tag = 'scoped memory for tpu_custom_call.1']
    #allocation4 [shape = 's32[2]{0}', space=sflag, size = 0x8, scoped, tag = 'scoped memory for tpu_custom_call.1']
    #allocation5 [shape = 'u8[131072]{0}', space=vmem, size = 0x20000, scoped, tag = 'input window, operand 1, single buffered']
    #allocation6 [shape = 's32[1]{0}', space=sflag, size = 0x4, scoped, tag = 'scoped memory for tpu_custom_call.1']
    #allocation7 [shape = 'u8[65536]{0}', space=vmem, size = 0x10000, scoped, tag = 'output window, operand 0']
    %8 = vsyncpa [#allocation3], 0
    %s9 = scalar_lea.sflag [#allocation3], 1
    %10 = vsyncpa %s9, 0
    %11 = vsyncpa [#allocation6], 0
    %12 = vsyncpa [#allocation4], 0
    %s13 = scalar_lea.sflag [#allocation4], 1
    %14 = vsyncpa %s13, 0
    loop: start=0, step=1, limit=4
    $region2: #{tpu_custom_call.1} parent=1 // loop_pre_header
      _
    $region3: #{tpu_custom_call.1} parent=1 // loop_header
      %s16 = sphi 0, %s20
      %p17 = scmp.ge.s32.totalorder %s16, 4
      %s26 = sphi 0, %s28
      %s29 = sphi 0, %s26
      %s30 = sphi 0, %s29
      %s46 = sphi 0, %s30
      %s50 = sphi 0, %s50
      %s52 = sphi 0, %s50
      %s53 = sphi 0, %s52
      %s67 = sphi 0, %s53
      %s71 = sphi 0, %s71
      %s73 = sphi 0, %s71
      %s74 = sphi 0, %s73
      %s88 = sphi 0, %s74
      %s94 = sphi 0, %s96
      %s97 = sphi 0, %s94
      %s98 = sphi 0, %s97
      %s114 = sphi 0, %s98
    $region4: #{tpu_custom_call.1} parent=1 // loop_header_branch
      %19 = sbr.rel (%p17) target = $region8
    $region5: #{tpu_custom_call.1} parent=1 // loop_body
      %s21 = ssub.s32 %s16, 1
      %s22 = ssub.s32 %s16, 2
      %s23 = sadd.s32 %s16, 1
      %s24 = ssub.s32 %s16, %s23
      %p25 = scmp.eq.s32.totalorder %s24, 0
      %s27 = sadd.s32 %s26, 1
      %s28 = scalar_select %p25, %s26, %s27
      %p31 = pneg %p25
      %p32 = scmp.eq.s32.totalorder %s16, 1
      %p33 = por %p31, %p32
      %p34 = scmp.ne.s32.totalorder %s26, %s29
      %p35 = scmp.eq.s32.totalorder %s16, 0
      %p36 = por %p34, %p35
      %p37 = scmp.ne.s32.totalorder %s26, %s29
      %p38 = scmp.eq.s32.totalorder %s21, 1
      %p39 = por %p37, %p38
      %p40 = scmp.ne.s32.totalorder %s29, %s30
      %p41 = scmp.eq.s32.totalorder %s21, 0
      %p42 = por %p40, %p41
      %p43 = scmp.ne.s32.totalorder %s29, %s30
      %p44 = scmp.eq.s32.totalorder %s22, 1
      %p45 = por %p43, %p44
      %p47 = scmp.ne.s32.totalorder %s30, %s46
      %p48 = scmp.eq.s32.totalorder %s22, 0
      %p49 = por %p47, %p48
      %s51 = sadd.s32 %s50, 1
      %p54 = scmp.eq.s32.totalorder %s16, 1
      %p55 = scmp.ne.s32.totalorder %s50, %s52
      %p56 = scmp.eq.s32.totalorder %s16, 0
      %p57 = por %p55, %p56
      %p58 = scmp.ne.s32.totalorder %s50, %s52
      %p59 = scmp.eq.s32.totalorder %s21, 1
      %p60 = por %p58, %p59
      %p61 = scmp.ne.s32.totalorder %s52, %s53
      %p62 = scmp.eq.s32.totalorder %s21, 0
      %p63 = por %p61, %p62
      %p64 = scmp.ne.s32.totalorder %s52, %s53
      %p65 = scmp.eq.s32.totalorder %s22, 1
      %p66 = por %p64, %p65
      %p68 = scmp.ne.s32.totalorder %s53, %s67
      %p69 = scmp.eq.s32.totalorder %s22, 0
      %p70 = por %p68, %p69
      %s72 = sadd.s32 %s71, 1
      %p75 = scmp.eq.s32.totalorder %s16, 1
      %p76 = scmp.ne.s32.totalorder %s71, %s73
      %p77 = scmp.eq.s32.totalorder %s16, 0
      %p78 = por %p76, %p77
      %p79 = scmp.ne.s32.totalorder %s71, %s73
      %p80 = scmp.eq.s32.totalorder %s21, 1
      %p81 = por %p79, %p80
      %p82 = scmp.ne.s32.totalorder %s73, %s74
      %p83 = scmp.eq.s32.totalorder %s21, 0
      %p84 = por %p82, %p83
      %p85 = scmp.ne.s32.totalorder %s73, %s74
      %p86 = scmp.eq.s32.totalorder %s22, 1
      %p87 = por %p85, %p86
      %p89 = scmp.ne.s32.totalorder %s74, %s88
      %p90 = scmp.eq.s32.totalorder %s22, 0
      %p91 = por %p89, %p90
      %s92 = ssub.s32 %s16, %s23
      %p93 = scmp.eq.s32.totalorder %s92, 0
      %s95 = sadd.s32 %s94, 1
      %s96 = scalar_select %p93, %s94, %s95
      %p99 = pneg %p93
      %p100 = scmp.eq.s32.totalorder %s16, 1
      %p101 = por %p99, %p100
      %p102 = scmp.ne.s32.totalorder %s94, %s97
      %p103 = scmp.eq.s32.totalorder %s16, 0
      %p104 = por %p102, %p103
      %p105 = scmp.ne.s32.totalorder %s94, %s97
      %p106 = scmp.eq.s32.totalorder %s21, 1
      %p107 = por %p105, %p106
      %p108 = scmp.ne.s32.totalorder %s97, %s98
      %p109 = scmp.eq.s32.totalorder %s21, 0
      %p110 = por %p108, %p109
      %p111 = scmp.ne.s32.totalorder %s97, %s98
      %p112 = scmp.eq.s32.totalorder %s22, 1
      %p113 = por %p111, %p112
      %p115 = scmp.ne.s32.totalorder %s98, %s114
      %p116 = scmp.eq.s32.totalorder %s22, 0
      %p117 = por %p115, %p116
      %p118 = scmp.le.s32.totalorder 1, %s16
      %p119 = scmp.lt.s32.totalorder %s16, 3
      %p120 = pnand %p118, %p119
      %p121 = pneg %p120
      // Predicated region
      $region9: #{tpu_custom_call.1} parent=5 // pred_check
        _
      $region10: #{tpu_custom_call.1} parent=5 // pred_check_branch
        %123 = sbr.rel (%p120) target = $region12
      $region11: #{tpu_custom_call.1} parent=5 // pred_region
        %s124 = ssub.s32 %s16, 1
        // Predicated region
        $region13: #{tpu_custom_call.1} parent=11 // pred_check
          %p125 = pneg %p63
        $region14: #{tpu_custom_call.1} parent=11 // pred_check_branch
          %127 = sbr.rel (%p125) target = $region16
        $region15: #{tpu_custom_call.1} parent=11 // pred_region
          %s129 = ssub.s32 4096, 4096
          %130 = vsyncadd [#allocation6], %s129
          %s131 = sshll.u32 [#allocation5], 4
          %s132 = int_to_ptr.vmem [resolvable:$true] %s131
          %137 = dma.hbm_to_vmem [thread:$0]  %s1, 4096, %s132, [#allocation6], 256, 256, 16
        $region16: #{tpu_custom_call.1} parent=11 // pred_fallthru
          _
        // Predicated region
        $region17: #{tpu_custom_call.1} parent=11 // pred_check
          %p138 = pneg %p84
        $region18: #{tpu_custom_call.1} parent=11 // pred_check_branch
          %140 = sbr.rel (%p138) target = $region20
        $region19: #{tpu_custom_call.1} parent=11 // pred_region
          _
        $region20: #{tpu_custom_call.1} parent=11 // pred_fallthru
          _
      $region12: #{tpu_custom_call.1} parent=5 // pred_fallthru
        _
      %p141 = scmp.lt.s32.totalorder %s16, 2
      // Predicated region
      $region21: #{tpu_custom_call.1} parent=5 // pred_check
        %p142 = pneg %p141
      $region22: #{tpu_custom_call.1} parent=5 // pred_check_branch
        %144 = sbr.rel (%p142) target = $region24
      $region23: #{tpu_custom_call.1} parent=5 // pred_region
        // Predicated region
        $region25: #{tpu_custom_call.1} parent=23 // pred_check
          %p145 = pneg %p36
        $region26: #{tpu_custom_call.1} parent=23 // pred_check_branch
          %147 = sbr.rel (%p145) target = $region28
        $region27: #{tpu_custom_call.1} parent=23 // pred_region
          %s148 = sand.u32 %s26, 1
          %s149 = scalar_lea.sflag [#allocation3], %s148
          %s150 = sand.u32 %s26, 1
          %s151 = smul.addr %s150, 64
          %s152 = scalar_lea.vmem [#allocation2], %s151
          %s153 = smul.u32 4, %s16
          %s155 = ssub.s32 1024, 1024
          %156 = vsyncadd %s149, %s155
          %s157 = smul.addr %s153, 2
          %s158 = smul.addr %s157, 128
          %s159 = scalar_lea.hbm %s0, %s158
          %s160 = sshll.u32 %s152, 4
          %s161 = int_to_ptr.vmem [resolvable:$true] %s160
          %166 = dma.hbm_to_vmem [thread:$0]  %s159, 1024, %s161, %s149, 128, 128, 8
        $region28: #{tpu_custom_call.1} parent=23 // pred_fallthru
          _
      $region24: #{tpu_custom_call.1} parent=5 // pred_fallthru
        _
      %p167 = scmp.le.s32.totalorder 1, %s16
      %p168 = scmp.lt.s32.totalorder %s16, 3
      %p169 = pnand %p167, %p168
      %p170 = pneg %p169
      // Predicated region
      $region29: #{tpu_custom_call.1} parent=5 // pred_check
        _
      $region30: #{tpu_custom_call.1} parent=5 // pred_check_branch
        %172 = sbr.rel (%p169) target = $region32
      $region31: #{tpu_custom_call.1} parent=5 // pred_region
        %s173 = ssub.s32 %s16, 1
        %s174 = sand.u32 %s29, 1
        %s175 = scalar_lea.sflag [#allocation3], %s174
        %s176 = sand.u32 %s29, 1
        %s177 = smul.addr %s176, 64
        %s178 = scalar_lea.vmem [#allocation2], %s177
        // Predicated region
        $region33: #{tpu_custom_call.1} parent=31 // pred_check
          %p179 = pneg %p42
        $region34: #{tpu_custom_call.1} parent=31 // pred_check_branch
          %181 = sbr.rel (%p179) target = $region36
        $region35: #{tpu_custom_call.1} parent=31 // pred_region
          %182 = dma.done %s175, 1024
        $region36: #{tpu_custom_call.1} parent=31 // pred_fallthru
          _
        // Predicated region
        $region37: #{tpu_custom_call.1} parent=31 // pred_check
          %p183 = pneg %p63
        $region38: #{tpu_custom_call.1} parent=31 // pred_check_branch
          %185 = sbr.rel (%p183) target = $region40
        $region39: #{tpu_custom_call.1} parent=31 // pred_region
          %186 = dma.done [#allocation6], 4096
        $region40: #{tpu_custom_call.1} parent=31 // pred_fallthru
          _
        %s187 = sand.u32 %s29, 1
        %s188 = scalar_lea.sflag [#allocation3], %s187
        %s189 = sand.u32 %s29, 1
        %s190 = smul.addr %s189, 64
        %s191 = scalar_lea.vmem [#allocation2], %s190
        %p192 = pneg %p42
        %p193 = pneg %p39
        %p194 = pneg %p63
        %p195 = pneg %p60
        %p196 = pneg %p84
        %p197 = pneg %p81
        %p198 = pneg %p110
        %p199 = pneg %p107
        %s200 = sand.u32 %s97, 1
        %s201 = scalar_lea.sflag [#allocation4], %s200
        %s202 = sand.u32 %s97, 1
        %s203 = smul.addr %s202, 64
        %s204 = scalar_lea.vmem [#allocation7], %s203
        %s205 = smul.u32 4, %s21
        %s206 = smul.u32 4, %s21
        %v207 = vld [vmem:[%s178] sm:$0xff]
        %v208 = vld [vmem:[%s178 + $0x8] sm:$0xff]
        %v209 = vld [vmem:[%s178 + $0x10] sm:$0xff]
        %v210 = vld [vmem:[%s178 + $0x18] sm:$0xff]
        %v211 = vld [vmem:[%s178 + $0x20] sm:$0xff]
        %v212 = vld [vmem:[%s178 + $0x28] sm:$0xff]
        %v213 = vld [vmem:[%s178 + $0x30] sm:$0xff]
        %v214 = vld [vmem:[%s178 + $0x38] sm:$0xff]
        %v215 = vld [vmem:[#allocation5] sm:$0xff]
        %v216 = vld [vmem:[#allocation5 + $0x8] sm:$0xff]
        %v217 = vld [vmem:[#allocation5 + $0x10] sm:$0xff]
        %v218 = vld [vmem:[#allocation5 + $0x18] sm:$0xff]
        %v219 = vld [vmem:[#allocation5 + $0x20] sm:$0xff]
        %v220 = vld [vmem:[#allocation5 + $0x28] sm:$0xff]
        %v221 = vld [vmem:[#allocation5 + $0x30] sm:$0xff]
        %v222 = vld [vmem:[#allocation5 + $0x38] sm:$0xff]
        %v223 = vld [vmem:[#allocation5 + $0x40] sm:$0xff]
        %v224 = vld [vmem:[#allocation5 + $0x48] sm:$0xff]
        %v225 = vld [vmem:[#allocation5 + $0x50] sm:$0xff]
        %v226 = vld [vmem:[#allocation5 + $0x58] sm:$0xff]
        %v227 = vld [vmem:[#allocation5 + $0x60] sm:$0xff]
        %v228 = vld [vmem:[#allocation5 + $0x68] sm:$0xff]
        %v229 = vld [vmem:[#allocation5 + $0x70] sm:$0xff]
        %v230 = vld [vmem:[#allocation5 + $0x78] sm:$0xff]
        %v231 = vld [vmem:[#allocation5 + $0x80] sm:$0xff]
        %v232 = vld [vmem:[#allocation5 + $0x88] sm:$0xff]
        %v233 = vld [vmem:[#allocation5 + $0x90] sm:$0xff]
        %v234 = vld [vmem:[#allocation5 + $0x98] sm:$0xff]
        %v235 = vld [vmem:[#allocation5 + $0xa0] sm:$0xff]
        %v236 = vld [vmem:[#allocation5 + $0xa8] sm:$0xff]
        %v237 = vld [vmem:[#allocation5 + $0xb0] sm:$0xff]
        %v238 = vld [vmem:[#allocation5 + $0xb8] sm:$0xff]
        %v239 = vld [vmem:[#allocation5 + $0xc0] sm:$0xff]
        %v240 = vld [vmem:[#allocation5 + $0xc8] sm:$0xff]
        %v241 = vld [vmem:[#allocation5 + $0xd0] sm:$0xff]
        %v242 = vld [vmem:[#allocation5 + $0xd8] sm:$0xff]
        %v243 = vld [vmem:[#allocation5 + $0xe0] sm:$0xff]
        %v244 = vld [vmem:[#allocation5 + $0xe8] sm:$0xff]
        %v245 = vld [vmem:[#allocation5 + $0xf0] sm:$0xff]
        %v246 = vld [vmem:[#allocation5 + $0xf8] sm:$0xff]
        %247 = vmatprep.subr.mxu0 %v216
        %248 = vmatpush1.msra.mxu0 %v215
        %249 = vmatprep.subr.mxu0 %v218
        %250 = vmatpush1.msra.mxu0 %v217
        %251 = vmatprep.subr.mxu0 %v220
        %252 = vmatpush1.msra.mxu0 %v219
        %253 = vmatprep.subr.mxu0 %v222
        %254 = vmatpush1.msra.mxu0 %v221
        %255 = vmatprep.subr.mxu0 %v224
        %256 = vmatpush1.msra.mxu0 %v223
        %257 = vmatprep.subr.mxu0 %v226
        %258 = vmatpush1.msra.mxu0 %v225
        %259 = vmatprep.subr.mxu0 %v228
        %260 = vmatpush1.msra.mxu0 %v227
        %261 = vmatprep.subr.mxu0 %v230
        %262 = vmatpush1.msra.mxu0 %v229
        %263 = vmatprep.subr.mxu0 %v232
        %264 = vmatpush1.msra.mxu0 %v231
        %265 = vmatprep.subr.mxu0 %v234
        %266 = vmatpush1.msra.mxu0 %v233
        %267 = vmatprep.subr.mxu0 %v236
        %268 = vmatpush1.msra.mxu0 %v235
        %269 = vmatprep.subr.mxu0 %v238
        %270 = vmatpush1.msra.mxu0 %v237
        %271 = vmatprep.subr.mxu0 %v240
        %272 = vmatpush1.msra.mxu0 %v239
        %273 = vmatprep.subr.mxu0 %v242
        %274 = vmatpush1.msra.mxu0 %v241
        %275 = vmatprep.subr.mxu0 %v244
        %276 = vmatpush1.msra.mxu0 %v243
        %277 = vmatprep.subr.mxu0 %v246
        %278 = vmatpush1.msra.mxu0 %v245
        %279 = vmatprep.subr.mxu0 0.0
        %280 = vmatpush1.msra.mxu0 0.0
        %281 = vmatprep.subr.mxu0 0.0
        %282 = vmatpush1.msra.mxu0 0.0
        %283 = vmatprep.subr.mxu0 0.0
        %284 = vmatpush1.msra.mxu0 0.0
        %285 = vmatprep.subr.mxu0 0.0
        %286 = vmatpush1.msra.mxu0 0.0
        %287 = vmatprep.subr.mxu0 0.0
        %288 = vmatpush1.msra.mxu0 0.0
        %289 = vmatprep.subr.mxu0 0.0
        %290 = vmatpush1.msra.mxu0 0.0
        %291 = vmatprep.subr.mxu0 0.0
        %292 = vmatpush1.msra.mxu0 0.0
        %293 = vmatprep.subr.mxu0 0.0
        %294 = vmatpush1.msra.mxu0 0.0
        %295 = vmatprep.subr.mxu0 0.0
        %296 = vmatpush1.msra.mxu0 0.0
        %297 = vmatprep.subr.mxu0 0.0
        %298 = vmatpush1.msra.mxu0 0.0
        %299 = vmatprep.subr.mxu0 0.0
        %300 = vmatpush1.msra.mxu0 0.0
        %301 = vmatprep.subr.mxu0 0.0
        %302 = vmatpush1.msra.mxu0 0.0
        %303 = vmatprep.subr.mxu0 0.0
        %304 = vmatpush1.msra.mxu0 0.0
        %305 = vmatprep.subr.mxu0 0.0
        %306 = vmatpush1.msra.mxu0 0.0
        %307 = vmatprep.subr.mxu0 0.0
        %308 = vmatpush1.msra.mxu0 0.0
        %309 = vmatprep.subr.mxu0 0.0
        %310 = vmatpush1.msra.mxu0 0.0
        %311 = vmatprep.mubr.f32.mxu0 0.0
        %312 = vmatmul.mubr.f32.gmra.mrb[0].mxu0 %v207
        %v313 = vpop.f32.mrb[0].mxu0
        %v314 = vadd.f32 0.0, %v313
        %v315 = vpop.f32.mrb[0].mxu0
        %v316 = vadd.f32 0.0, %v315
        %317 = vmatprep.mubr.f32.mxu0 0.0
        %318 = vmatmul.mubr.f32.gmra.mrb[0].mxu0 %v208
        %v319 = vpop.f32.mrb[0].mxu0
        %v320 = vadd.f32 0.0, %v319
        %v321 = vpop.f32.mrb[0].mxu0
        %v322 = vadd.f32 0.0, %v321
        %323 = vmatprep.mubr.f32.mxu0 0.0
        %324 = vmatmul.mubr.f32.gmra.mrb[0].mxu0 %v209
        %v325 = vpop.f32.mrb[0].mxu0
        %v326 = vadd.f32 0.0, %v325
        %v327 = vpop.f32.mrb[0].mxu0
        %v328 = vadd.f32 0.0, %v327
        %329 = vmatprep.mubr.f32.mxu0 0.0
        %330 = vmatmul.mubr.f32.gmra.mrb[0].mxu0 %v210
        %v331 = vpop.f32.mrb[0].mxu0
        %v332 = vadd.f32 0.0, %v331
        %v333 = vpop.f32.mrb[0].mxu0
        %v334 = vadd.f32 0.0, %v333
        %335 = vmatprep.mubr.f32.mxu0 0.0
        %336 = vmatmul.mubr.f32.gmra.mrb[0].mxu0 %v211
        %v337 = vpop.f32.mrb[0].mxu0
        %v338 = vadd.f32 0.0, %v337
        %v339 = vpop.f32.mrb[0].mxu0
        %v340 = vadd.f32 0.0, %v339
        %341 = vmatprep.mubr.f32.mxu0 0.0
        %342 = vmatmul.mubr.f32.gmra.mrb[0].mxu0 %v212
        %v343 = vpop.f32.mrb[0].mxu0
        %v344 = vadd.f32 0.0, %v343
        %v345 = vpop.f32.mrb[0].mxu0
        %v346 = vadd.f32 0.0, %v345
        %347 = vmatprep.mubr.f32.mxu0 0.0
        %348 = vmatmul.mubr.f32.gmra.mrb[0].mxu0 %v213
        %v349 = vpop.f32.mrb[0].mxu0
        %v350 = vadd.f32 0.0, %v349
        %v351 = vpop.f32.mrb[0].mxu0
        %v352 = vadd.f32 0.0, %v351
        %353 = vmatprep.mubr.f32.mxu0 0.0
        %354 = vmatmul.mubr.f32.gmra.mrb[0].mxu0 %v214
        %v355 = vpop.f32.mrb[0].mxu0
        %v356 = vadd.f32 0.0, %v355
        %v357 = vpop.f32.mrb[0].mxu0
        %v358 = vadd.f32 0.0, %v357
        %359 = vdwg.mxu0
        %v360 = vld [vmem:[%s2] sm:$0xff]
        %v361 = vld [vmem:[%s2 + $0x8] sm:$0xff]
        %v362 = vld [vmem:[%s2 + $0x10] sm:$0xff]
        %v363 = vld [vmem:[%s2 + $0x18] sm:$0xff]
        %vm364 = vcmask 130048
        %v366 = vsel %vm364, %v360, 0
        %v369 = vsel %vm364, %v361, 0
        %v372 = vsel %vm364, %v362, 0
        %v375 = vsel %vm364, %v363, 0
        %377 = vmatprep.subr.mxu0 %v316
        %378 = vmatpush1.msra.mxu0 %v314
        %379 = vmatprep.subr.mxu0 %v322
        %380 = vmatpush1.msra.mxu0 %v320
        %381 = vmatprep.subr.mxu0 0.0
        %382 = vmatpush1.msra.mxu0 0.0
        %383 = vmatprep.subr.mxu0 0.0
        %384 = vmatpush1.msra.mxu0 0.0
        %385 = vmatprep.subr.mxu0 0.0
        %386 = vmatpush1.msra.mxu0 0.0
        %387 = vmatprep.subr.mxu0 0.0
        %388 = vmatpush1.msra.mxu0 0.0
        %389 = vmatprep.subr.mxu0 0.0
        %390 = vmatpush1.msra.mxu0 0.0
        %391 = vmatprep.subr.mxu0 0.0
        %392 = vmatpush1.msra.mxu0 0.0
        %393 = vmatprep.subr.mxu0 0.0
        %394 = vmatpush1.msra.mxu0 0.0
        %395 = vmatprep.subr.mxu0 0.0
        %396 = vmatpush1.msra.mxu0 0.0
        %397 = vmatprep.subr.mxu0 0.0
        %398 = vmatpush1.msra.mxu0 0.0
        %399 = vmatprep.subr.mxu0 0.0
        %400 = vmatpush1.msra.mxu0 0.0
        %401 = vmatprep.subr.mxu0 0.0
        %402 = vmatpush1.msra.mxu0 0.0
        %403 = vmatprep.subr.mxu0 0.0
        %404 = vmatpush1.msra.mxu0 0.0
        %405 = vmatprep.subr.mxu0 0.0
        %406 = vmatpush1.msra.mxu0 0.0
        %407 = vmatprep.subr.mxu0 0.0
        %408 = vmatpush1.msra.mxu0 0.0
        %409 = vmatprep.subr.mxu0 0.0
        %410 = vmatpush1.msra.mxu0 0.0
        %411 = vmatprep.subr.mxu0 0.0
        %412 = vmatpush1.msra.mxu0 0.0
        %413 = vmatprep.subr.mxu0 0.0
        %414 = vmatpush1.msra.mxu0 0.0
        %415 = vmatprep.subr.mxu0 0.0
        %416 = vmatpush1.msra.mxu0 0.0
        %417 = vmatprep.subr.mxu0 0.0
        %418 = vmatpush1.msra.mxu0 0.0
        %419 = vmatprep.subr.mxu0 0.0
        %420 = vmatpush1.msra.mxu0 0.0
        %421 = vmatprep.subr.mxu0 0.0
        %422 = vmatpush1.msra.mxu0 0.0
        %423 = vmatprep.subr.mxu0 0.0
        %424 = vmatpush1.msra.mxu0 0.0
        %425 = vmatprep.subr.mxu0 0.0
        %426 = vmatpush1.msra.mxu0 0.0
        %427 = vmatprep.subr.mxu0 0.0
        %428 = vmatpush1.msra.mxu0 0.0
        %429 = vmatprep.subr.mxu0 0.0
        %430 = vmatpush1.msra.mxu0 0.0
        %431 = vmatprep.subr.mxu0 0.0
        %432 = vmatpush1.msra.mxu0 0.0
        %433 = vmatprep.subr.mxu0 0.0
        %434 = vmatpush1.msra.mxu0 0.0
        %435 = vmatprep.subr.mxu0 0.0
        %436 = vmatpush1.msra.mxu0 0.0
        %437 = vmatprep.subr.mxu0 0.0
        %438 = vmatpush1.msra.mxu0 0.0
        %439 = vmatprep.subr.mxu0 0.0
        %440 = vmatpush1.msra.mxu0 0.0
        %441 = vmatprep.mubr.f32.mxu0 0.0
        %442 = vmatmul.mubr.f32.gmra.mrb[0].mxu0 %v366
        %v443 = vpop.f32.mrb[0].mxu0
        %v444 = vadd.f32 0.0, %v443
        %v445 = vpop.f32.mrb[0].mxu0
        %v446 = vadd.f32 0.0, %v445
        %447 = vmatprep.mubr.f32.mxu0 0.0
        %448 = vmatmul.mubr.f32.gmra.mrb[0].mxu0 %v369
        %v449 = vpop.f32.mrb[0].mxu0
        %v450 = vadd.f32 0.0, %v449
        %v451 = vpop.f32.mrb[0].mxu0
        %v452 = vadd.f32 0.0, %v451
        %453 = vmatprep.mubr.f32.mxu0 0.0
        %454 = vmatmul.mubr.f32.gmra.mrb[0].mxu0 %v372
        %v455 = vpop.f32.mrb[0].mxu0
        %v456 = vadd.f32 0.0, %v455
        %v457 = vpop.f32.mrb[0].mxu0
        %v458 = vadd.f32 0.0, %v457
        %459 = vmatprep.mubr.f32.mxu0 0.0
        %460 = vmatmul.mubr.f32.gmra.mrb[0].mxu0 %v375
        %v461 = vpop.f32.mrb[0].mxu0
        %v462 = vadd.f32 0.0, %v461
        %v463 = vpop.f32.mrb[0].mxu0
        %v464 = vadd.f32 0.0, %v463
        %465 = vdwg.mxu0
        %466 = vmatprep.subr.mxu0 %v328
        %467 = vmatpush1.msra.mxu0 %v326
        %468 = vmatprep.subr.mxu0 %v334
        %469 = vmatpush1.msra.mxu0 %v332
        %470 = vmatprep.subr.mxu0 0.0
        %471 = vmatpush1.msra.mxu0 0.0
        %472 = vmatprep.subr.mxu0 0.0
        %473 = vmatpush1.msra.mxu0 0.0
        %474 = vmatprep.subr.mxu0 0.0
        %475 = vmatpush1.msra.mxu0 0.0
        %476 = vmatprep.subr.mxu0 0.0
        %477 = vmatpush1.msra.mxu0 0.0
        %478 = vmatprep.subr.mxu0 0.0
        %479 = vmatpush1.msra.mxu0 0.0
        %480 = vmatprep.subr.mxu0 0.0
        %481 = vmatpush1.msra.mxu0 0.0
        %482 = vmatprep.subr.mxu0 0.0
        %483 = vmatpush1.msra.mxu0 0.0
        %484 = vmatprep.subr.mxu0 0.0
        %485 = vmatpush1.msra.mxu0 0.0
        %486 = vmatprep.subr.mxu0 0.0
        %487 = vmatpush1.msra.mxu0 0.0
        %488 = vmatprep.subr.mxu0 0.0
        %489 = vmatpush1.msra.mxu0 0.0
        %490 = vmatprep.subr.mxu0 0.0
        %491 = vmatpush1.msra.mxu0 0.0
        %492 = vmatprep.subr.mxu0 0.0
        %493 = vmatpush1.msra.mxu0 0.0
        %494 = vmatprep.subr.mxu0 0.0
        %495 = vmatpush1.msra.mxu0 0.0
        %496 = vmatprep.subr.mxu0 0.0
        %497 = vmatpush1.msra.mxu0 0.0
        %498 = vmatprep.subr.mxu0 0.0
        %499 = vmatpush1.msra.mxu0 0.0
        %500 = vmatprep.subr.mxu0 0.0
        %501 = vmatpush1.msra.mxu0 0.0
        %502 = vmatprep.subr.mxu0 0.0
        %503 = vmatpush1.msra.mxu0 0.0
        %504 = vmatprep.subr.mxu0 0.0
        %505 = vmatpush1.msra.mxu0 0.0
        %506 = vmatprep.subr.mxu0 0.0
        %507 = vmatpush1.msra.mxu0 0.0
        %508 = vmatprep.subr.mxu0 0.0
        %509 = vmatpush1.msra.mxu0 0.0
        %510 = vmatprep.subr.mxu0 0.0
        %511 = vmatpush1.msra.mxu0 0.0
        %512 = vmatprep.subr.mxu0 0.0
        %513 = vmatpush1.msra.mxu0 0.0
        %514 = vmatprep.subr.mxu0 0.0
        %515 = vmatpush1.msra.mxu0 0.0
        %516 = vmatprep.subr.mxu0 0.0
        %517 = vmatpush1.msra.mxu0 0.0
        %518 = vmatprep.subr.mxu0 0.0
        %519 = vmatpush1.msra.mxu0 0.0
        %520 = vmatprep.subr.mxu0 0.0
        %521 = vmatpush1.msra.mxu0 0.0
        %522 = vmatprep.subr.mxu0 0.0
        %523 = vmatpush1.msra.mxu0 0.0
        %524 = vmatprep.subr.mxu0 0.0
        %525 = vmatpush1.msra.mxu0 0.0
        %526 = vmatprep.subr.mxu0 0.0
        %527 = vmatpush1.msra.mxu0 0.0
        %528 = vmatprep.subr.mxu0 0.0
        %529 = vmatpush1.msra.mxu0 0.0
        %530 = vmatprep.mubr.f32.mxu0 0.0
        %531 = vmatmul.mubr.f32.gmra.mrb[0].mxu0 %v366
        %v532 = vpop.f32.mrb[0].mxu0
        %v533 = vadd.f32 0.0, %v532
        %v534 = vpop.f32.mrb[0].mxu0
        %v535 = vadd.f32 0.0, %v534
        %536 = vmatprep.mubr.f32.mxu0 0.0
        %537 = vmatmul.mubr.f32.gmra.mrb[0].mxu0 %v369
        %v538 = vpop.f32.mrb[0].mxu0
        %v539 = vadd.f32 0.0, %v538
        %v540 = vpop.f32.mrb[0].mxu0
        %v541 = vadd.f32 0.0, %v540
        %542 = vmatprep.mubr.f32.mxu0 0.0
        %543 = vmatmul.mubr.f32.gmra.mrb[0].mxu0 %v372
        %v544 = vpop.f32.mrb[0].mxu0
        %v545 = vadd.f32 0.0, %v544
        %v546 = vpop.f32.mrb[0].mxu0
        %v547 = vadd.f32 0.0, %v546
        %548 = vmatprep.mubr.f32.mxu0 0.0
        %549 = vmatmul.mubr.f32.gmra.mrb[0].mxu0 %v375
        %v550 = vpop.f32.mrb[0].mxu0
        %v551 = vadd.f32 0.0, %v550
        %v552 = vpop.f32.mrb[0].mxu0
        %v553 = vadd.f32 0.0, %v552
        %554 = vdwg.mxu0
        %555 = vmatprep.subr.mxu0 %v340
        %556 = vmatpush1.msra.mxu0 %v338
        %557 = vmatprep.subr.mxu0 %v346
        %558 = vmatpush1.msra.mxu0 %v344
        %559 = vmatprep.subr.mxu0 0.0
        %560 = vmatpush1.msra.mxu0 0.0
        %561 = vmatprep.subr.mxu0 0.0
        %562 = vmatpush1.msra.mxu0 0.0
        %563 = vmatprep.subr.mxu0 0.0
        %564 = vmatpush1.msra.mxu0 0.0
        %565 = vmatprep.subr.mxu0 0.0
        %566 = vmatpush1.msra.mxu0 0.0
        %567 = vmatprep.subr.mxu0 0.0
        %568 = vmatpush1.msra.mxu0 0.0
        %569 = vmatprep.subr.mxu0 0.0
        %570 = vmatpush1.msra.mxu0 0.0
        %571 = vmatprep.subr.mxu0 0.0
        %572 = vmatpush1.msra.mxu0 0.0
        %573 = vmatprep.subr.mxu0 0.0
        %574 = vmatpush1.msra.mxu0 0.0
        %575 = vmatprep.subr.mxu0 0.0
        %576 = vmatpush1.msra.mxu0 0.0
        %577 = vmatprep.subr.mxu0 0.0
        %578 = vmatpush1.msra.mxu0 0.0
        %579 = vmatprep.subr.mxu0 0.0
        %580 = vmatpush1.msra.mxu0 0.0
        %581 = vmatprep.subr.mxu0 0.0
        %582 = vmatpush1.msra.mxu0 0.0
        %583 = vmatprep.subr.mxu0 0.0
        %584 = vmatpush1.msra.mxu0 0.0
        %585 = vmatprep.subr.mxu0 0.0
        %586 = vmatpush1.msra.mxu0 0.0
        %587 = vmatprep.subr.mxu0 0.0
        %588 = vmatpush1.msra.mxu0 0.0
        %589 = vmatprep.subr.mxu0 0.0
        %590 = vmatpush1.msra.mxu0 0.0
        %591 = vmatprep.subr.mxu0 0.0
        %592 = vmatpush1.msra.mxu0 0.0
        %593 = vmatprep.subr.mxu0 0.0
        %594 = vmatpush1.msra.mxu0 0.0
        %595 = vmatprep.subr.mxu0 0.0
        %596 = vmatpush1.msra.mxu0 0.0
        %597 = vmatprep.subr.mxu0 0.0
        %598 = vmatpush1.msra.mxu0 0.0
        %599 = vmatprep.subr.mxu0 0.0
        %600 = vmatpush1.msra.mxu0 0.0
        %601 = vmatprep.subr.mxu0 0.0
        %602 = vmatpush1.msra.mxu0 0.0
        %603 = vmatprep.subr.mxu0 0.0
        %604 = vmatpush1.msra.mxu0 0.0
        %605 = vmatprep.subr.mxu0 0.0
        %606 = vmatpush1.msra.mxu0 0.0
        %607 = vmatprep.subr.mxu0 0.0
        %608 = vmatpush1.msra.mxu0 0.0
        %609 = vmatprep.subr.mxu0 0.0
        %610 = vmatpush1.msra.mxu0 0.0
        %611 = vmatprep.subr.mxu0 0.0
        %612 = vmatpush1.msra.mxu0 0.0
        %613 = vmatprep.subr.mxu0 0.0
        %614 = vmatpush1.msra.mxu0 0.0
        %615 = vmatprep.subr.mxu0 0.0
        %616 = vmatpush1.msra.mxu0 0.0
        %617 = vmatprep.subr.mxu0 0.0
        %618 = vmatpush1.msra.mxu0 0.0
        %619 = vmatprep.mubr.f32.mxu0 0.0
        %620 = vmatmul.mubr.f32.gmra.mrb[0].mxu0 %v366
        %v621 = vpop.f32.mrb[0].mxu0
        %v622 = vadd.f32 0.0, %v621
        %v623 = vpop.f32.mrb[0].mxu0
        %v624 = vadd.f32 0.0, %v623
        %625 = vmatprep.mubr.f32.mxu0 0.0
        %626 = vmatmul.mubr.f32.gmra.mrb[0].mxu0 %v369
        %v627 = vpop.f32.mrb[0].mxu0
        %v628 = vadd.f32 0.0, %v627
        %v629 = vpop.f32.mrb[0].mxu0
        %v630 = vadd.f32 0.0, %v629
        %631 = vmatprep.mubr.f32.mxu0 0.0
        %632 = vmatmul.mubr.f32.gmra.mrb[0].mxu0 %v372
        %v633 = vpop.f32.mrb[0].mxu0
        %v634 = vadd.f32 0.0, %v633
        %v635 = vpop.f32.mrb[0].mxu0
        %v636 = vadd.f32 0.0, %v635
        %637 = vmatprep.mubr.f32.mxu0 0.0
        %638 = vmatmul.mubr.f32.gmra.mrb[0].mxu0 %v375
        %v639 = vpop.f32.mrb[0].mxu0
        %v640 = vadd.f32 0.0, %v639
        %v641 = vpop.f32.mrb[0].mxu0
        %v642 = vadd.f32 0.0, %v641
        %643 = vdwg.mxu0
        %644 = vmatprep.subr.mxu0 %v352
        %645 = vmatpush1.msra.mxu0 %v350
        %646 = vmatprep.subr.mxu0 %v358
        %647 = vmatpush1.msra.mxu0 %v356
        %648 = vmatprep.subr.mxu0 0.0
        %649 = vmatpush1.msra.mxu0 0.0
        %650 = vmatprep.subr.mxu0 0.0
        %651 = vmatpush1.msra.mxu0 0.0
        %652 = vmatprep.subr.mxu0 0.0
        %653 = vmatpush1.msra.mxu0 0.0
        %654 = vmatprep.subr.mxu0 0.0
        %655 = vmatpush1.msra.mxu0 0.0
        %656 = vmatprep.subr.mxu0 0.0
        %657 = vmatpush1.msra.mxu0 0.0
        %658 = vmatprep.subr.mxu0 0.0
        %659 = vmatpush1.msra.mxu0 0.0
        %660 = vmatprep.subr.mxu0 0.0
        %661 = vmatpush1.msra.mxu0 0.0
        %662 = vmatprep.subr.mxu0 0.0
        %663 = vmatpush1.msra.mxu0 0.0
        %664 = vmatprep.subr.mxu0 0.0
        %665 = vmatpush1.msra.mxu0 0.0
        %666 = vmatprep.subr.mxu0 0.0
        %667 = vmatpush1.msra.mxu0 0.0
        %668 = vmatprep.subr.mxu0 0.0
        %669 = vmatpush1.msra.mxu0 0.0
        %670 = vmatprep.subr.mxu0 0.0
        %671 = vmatpush1.msra.mxu0 0.0
        %672 = vmatprep.subr.mxu0 0.0
        %673 = vmatpush1.msra.mxu0 0.0
        %674 = vmatprep.subr.mxu0 0.0
        %675 = vmatpush1.msra.mxu0 0.0
        %676 = vmatprep.subr.mxu0 0.0
        %677 = vmatpush1.msra.mxu0 0.0
        %678 = vmatprep.subr.mxu0 0.0
        %679 = vmatpush1.msra.mxu0 0.0
        %680 = vmatprep.subr.mxu0 0.0
        %681 = vmatpush1.msra.mxu0 0.0
        %682 = vmatprep.subr.mxu0 0.0
        %683 = vmatpush1.msra.mxu0 0.0
        %684 = vmatprep.subr.mxu0 0.0
        %685 = vmatpush1.msra.mxu0 0.0
        %686 = vmatprep.subr.mxu0 0.0
        %687 = vmatpush1.msra.mxu0 0.0
        %688 = vmatprep.subr.mxu0 0.0
        %689 = vmatpush1.msra.mxu0 0.0
        %690 = vmatprep.subr.mxu0 0.0
        %691 = vmatpush1.msra.mxu0 0.0
        %692 = vmatprep.subr.mxu0 0.0
        %693 = vmatpush1.msra.mxu0 0.0
        %694 = vmatprep.subr.mxu0 0.0
        %695 = vmatpush1.msra.mxu0 0.0
        %696 = vmatprep.subr.mxu0 0.0
        %697 = vmatpush1.msra.mxu0 0.0
        %698 = vmatprep.subr.mxu0 0.0
        %699 = vmatpush1.msra.mxu0 0.0
        %700 = vmatprep.subr.mxu0 0.0
        %701 = vmatpush1.msra.mxu0 0.0
        %702 = vmatprep.subr.mxu0 0.0
        %703 = vmatpush1.msra.mxu0 0.0
        %704 = vmatprep.subr.mxu0 0.0
        %705 = vmatpush1.msra.mxu0 0.0
        %706 = vmatprep.subr.mxu0 0.0
        %707 = vmatpush1.msra.mxu0 0.0
        %708 = vmatprep.mubr.f32.mxu0 0.0
        %709 = vmatmul.mubr.f32.gmra.mrb[0].mxu0 %v366
        %v710 = vpop.f32.mrb[0].mxu0
        %v711 = vadd.f32 0.0, %v710
        %v712 = vpop.f32.mrb[0].mxu0
        %v713 = vadd.f32 0.0, %v712
        %714 = vmatprep.mubr.f32.mxu0 0.0
        %715 = vmatmul.mubr.f32.gmra.mrb[0].mxu0 %v369
        %v716 = vpop.f32.mrb[0].mxu0
        %v717 = vadd.f32 0.0, %v716
        %v718 = vpop.f32.mrb[0].mxu0
        %v719 = vadd.f32 0.0, %v718
        %720 = vmatprep.mubr.f32.mxu0 0.0
        %721 = vmatmul.mubr.f32.gmra.mrb[0].mxu0 %v372
        %v722 = vpop.f32.mrb[0].mxu0
        %v723 = vadd.f32 0.0, %v722
        %v724 = vpop.f32.mrb[0].mxu0
        %v725 = vadd.f32 0.0, %v724
        %726 = vmatprep.mubr.f32.mxu0 0.0
        %727 = vmatmul.mubr.f32.gmra.mrb[0].mxu0 %v375
        %v728 = vpop.f32.mrb[0].mxu0
        %v729 = vadd.f32 0.0, %v728
        %v730 = vpop.f32.mrb[0].mxu0
        %v731 = vadd.f32 0.0, %v730
        %732 = vdwg.mxu0
        %v733 = vsub.f32 %v444, %v458
        %v734 = vsub.f32 %v450, %v464
        %v735 = vsub.f32 %v533, %v547
        %v736 = vsub.f32 %v539, %v553
        %v737 = vsub.f32 %v622, %v636
        %v738 = vsub.f32 %v628, %v642
        %v739 = vsub.f32 %v711, %v725
        %v740 = vsub.f32 %v717, %v731
        %v741 = vadd.f32 %v456, %v446
        %v742 = vadd.f32 %v462, %v452
        %v743 = vadd.f32 %v545, %v535
        %v744 = vadd.f32 %v551, %v541
        %v745 = vadd.f32 %v634, %v624
        %v746 = vadd.f32 %v640, %v630
        %v747 = vadd.f32 %v723, %v713
        %v748 = vadd.f32 %v729, %v719
        %v749 = vmul.f32 %v733, %v733
        %v750 = vmul.f32 %v734, %v734
        %v751 = vmul.f32 %v735, %v735
        %v752 = vmul.f32 %v736, %v736
        %v753 = vmul.f32 %v737, %v737
        %v754 = vmul.f32 %v738, %v738
        %v755 = vmul.f32 %v739, %v739
        %v756 = vmul.f32 %v740, %v740
        %v757 = vmul.f32 %v741, %v741
        %v758 = vmul.f32 %v742, %v742
        %v759 = vmul.f32 %v743, %v743
        %v760 = vmul.f32 %v744, %v744
        %v761 = vmul.f32 %v745, %v745
        %v762 = vmul.f32 %v746, %v746
        %v763 = vmul.f32 %v747, %v747
        %v764 = vmul.f32 %v748, %v748
        %v765 = vadd.f32 %v749, %v757
        %v766 = vadd.f32 %v750, %v758
        %v767 = vadd.f32 %v751, %v759
        %v768 = vadd.f32 %v752, %v760
        %v769 = vadd.f32 %v753, %v761
        %v770 = vadd.f32 %v754, %v762
        %v771 = vadd.f32 %v755, %v763
        %v772 = vadd.f32 %v756, %v764
        %v773 = vrsqrt.pop %v765
        %v774 = vmul.f32 %v765, %v773
        %vm775 = vcmp.eq.f32.partialorder %v765, inf
        %v776 = vsel %vm775, %v765, %v774
        %vm777 = vcmp.eq.f32.partialorder %v765, 0.0
        %v778 = vand.u32 %v765, 2147483648
        %v779 = vsel %vm777, %v778, %v776
        %v780 = vrsqrt.pop %v766
        %v781 = vmul.f32 %v766, %v780
        %vm782 = vcmp.eq.f32.partialorder %v766, inf
        %v783 = vsel %vm782, %v766, %v781
        %vm784 = vcmp.eq.f32.partialorder %v766, 0.0
        %v785 = vand.u32 %v766, 2147483648
        %v786 = vsel %vm784, %v785, %v783
        %v787 = vrsqrt.pop %v767
        %v788 = vmul.f32 %v767, %v787
        %vm789 = vcmp.eq.f32.partialorder %v767, inf
        %v790 = vsel %vm789, %v767, %v788
        %vm791 = vcmp.eq.f32.partialorder %v767, 0.0
        %v792 = vand.u32 %v767, 2147483648
        %v793 = vsel %vm791, %v792, %v790
        %v794 = vrsqrt.pop %v768
        %v795 = vmul.f32 %v768, %v794
        %vm796 = vcmp.eq.f32.partialorder %v768, inf
        %v797 = vsel %vm796, %v768, %v795
        %vm798 = vcmp.eq.f32.partialorder %v768, 0.0
        %v799 = vand.u32 %v768, 2147483648
        %v800 = vsel %vm798, %v799, %v797
        %v801 = vrsqrt.pop %v769
        %v802 = vmul.f32 %v769, %v801
        %vm803 = vcmp.eq.f32.partialorder %v769, inf
        %v804 = vsel %vm803, %v769, %v802
        %vm805 = vcmp.eq.f32.partialorder %v769, 0.0
        %v806 = vand.u32 %v769, 2147483648
        %v807 = vsel %vm805, %v806, %v804
        %v808 = vrsqrt.pop %v770
        %v809 = vmul.f32 %v770, %v808
        %vm810 = vcmp.eq.f32.partialorder %v770, inf
        %v811 = vsel %vm810, %v770, %v809
        %vm812 = vcmp.eq.f32.partialorder %v770, 0.0
        %v813 = vand.u32 %v770, 2147483648
        %v814 = vsel %vm812, %v813, %v811
        %v815 = vrsqrt.pop %v771
        %v816 = vmul.f32 %v771, %v815
        %vm817 = vcmp.eq.f32.partialorder %v771, inf
        %v818 = vsel %vm817, %v771, %v816
        %vm819 = vcmp.eq.f32.partialorder %v771, 0.0
        %v820 = vand.u32 %v771, 2147483648
        %v821 = vsel %vm819, %v820, %v818
        %v822 = vrsqrt.pop %v772
        %v823 = vmul.f32 %v772, %v822
        %vm824 = vcmp.eq.f32.partialorder %v772, inf
        %v825 = vsel %vm824, %v772, %v823
        %vm826 = vcmp.eq.f32.partialorder %v772, 0.0
        %v827 = vand.u32 %v772, 2147483648
        %v828 = vsel %vm826, %v827, %v825
        %v829 = vadd.f32 %v779, 1.0
        %v830 = vlog2.pop %v829
        %v831 = vmul.f32 %v830, 0.6931472
        %v832 = vmul.f32 -0.5, %v779
        %v833 = vadd.f32 %v832, 1.0
        %v834 = vmul.f32 %v833, %v779
        %v835 = vand.u32 2147483647, %v779
        %vm836 = vcmp.lt.f32.partialorder %v835, 0.0004427343
        %v837 = vsel %vm836, %v834, %v831
        %v838 = vadd.f32 %v786, 1.0
        %v839 = vlog2.pop %v838
        %v840 = vmul.f32 %v839, 0.6931472
        %v841 = vmul.f32 -0.5, %v786
        %v842 = vadd.f32 %v841, 1.0
        %v843 = vmul.f32 %v842, %v786
        %v844 = vand.u32 2147483647, %v786
        %vm845 = vcmp.lt.f32.partialorder %v844, 0.0004427343
        %v846 = vsel %vm845, %v843, %v840
        %v847 = vadd.f32 %v793, 1.0
        %v848 = vlog2.pop %v847
        %v849 = vmul.f32 %v848, 0.6931472
        %v850 = vmul.f32 -0.5, %v793
        %v851 = vadd.f32 %v850, 1.0
        %v852 = vmul.f32 %v851, %v793
        %v853 = vand.u32 2147483647, %v793
        %vm854 = vcmp.lt.f32.partialorder %v853, 0.0004427343
        %v855 = vsel %vm854, %v852, %v849
        %v856 = vadd.f32 %v800, 1.0
        %v857 = vlog2.pop %v856
        %v858 = vmul.f32 %v857, 0.6931472
        %v859 = vmul.f32 -0.5, %v800
        %v860 = vadd.f32 %v859, 1.0
        %v861 = vmul.f32 %v860, %v800
        %v862 = vand.u32 2147483647, %v800
        %vm863 = vcmp.lt.f32.partialorder %v862, 0.0004427343
        %v864 = vsel %vm863, %v861, %v858
        %v865 = vadd.f32 %v807, 1.0
        %v866 = vlog2.pop %v865
        %v867 = vmul.f32 %v866, 0.6931472
        %v868 = vmul.f32 -0.5, %v807
        %v869 = vadd.f32 %v868, 1.0
        %v870 = vmul.f32 %v869, %v807
        %v871 = vand.u32 2147483647, %v807
        %vm872 = vcmp.lt.f32.partialorder %v871, 0.0004427343
        %v873 = vsel %vm872, %v870, %v867
        %v874 = vadd.f32 %v814, 1.0
        %v875 = vlog2.pop %v874
        %v876 = vmul.f32 %v875, 0.6931472
        %v877 = vmul.f32 -0.5, %v814
        %v878 = vadd.f32 %v877, 1.0
        %v879 = vmul.f32 %v878, %v814
        %v880 = vand.u32 2147483647, %v814
        %vm881 = vcmp.lt.f32.partialorder %v880, 0.0004427343
        %v882 = vsel %vm881, %v879, %v876
        %v883 = vadd.f32 %v821, 1.0
        %v884 = vlog2.pop %v883
        %v885 = vmul.f32 %v884, 0.6931472
        %v886 = vmul.f32 -0.5, %v821
        %v887 = vadd.f32 %v886, 1.0
        %v888 = vmul.f32 %v887, %v821
        %v889 = vand.u32 2147483647, %v821
        %vm890 = vcmp.lt.f32.partialorder %v889, 0.0004427343
        %v891 = vsel %vm890, %v888, %v885
        %v892 = vadd.f32 %v828, 1.0
        %v893 = vlog2.pop %v892
        %v894 = vmul.f32 %v893, 0.6931472
        %v895 = vmul.f32 -0.5, %v828
        %v896 = vadd.f32 %v895, 1.0
        %v897 = vmul.f32 %v896, %v828
        %v898 = vand.u32 2147483647, %v828
        %vm899 = vcmp.lt.f32.partialorder %v898, 0.0004427343
        %v900 = vsel %vm899, %v897, %v894
        %901 = vst [vmem:[%s204] sm:$0xff] %v837
        %902 = vst [vmem:[%s204 + $0x8] sm:$0xff] %v846
        %903 = vst [vmem:[%s204 + $0x10] sm:$0xff] %v855
        %904 = vst [vmem:[%s204 + $0x18] sm:$0xff] %v864
        %905 = vst [vmem:[%s204 + $0x20] sm:$0xff] %v873
        %906 = vst [vmem:[%s204 + $0x28] sm:$0xff] %v882
        %907 = vst [vmem:[%s204 + $0x30] sm:$0xff] %v891
        %908 = vst [vmem:[%s204 + $0x38] sm:$0xff] %v900
        %s909 = sand.u32 %s97, 1
        %s910 = scalar_lea.sflag [#allocation4], %s909
        %s911 = sand.u32 %s97, 1
        %s912 = smul.addr %s911, 64
        %s913 = scalar_lea.vmem [#allocation7], %s912
        // Predicated region
        $region41: #{tpu_custom_call.1} parent=31 // pred_check
          %p914 = pneg %p107
        $region42: #{tpu_custom_call.1} parent=31 // pred_check_branch
          %916 = sbr.rel (%p914) target = $region44
        $region43: #{tpu_custom_call.1} parent=31 // pred_region
          %s917 = smul.u32 4, %s21
          %s919 = ssub.s32 1024, 1024
          %920 = vsyncadd %s910, %s919
          %s921 = smul.addr %s917, 2
          %s922 = smul.addr %s921, 128
          %s923 = scalar_lea.hbm %s3, %s922
          %s924 = sshll.u32 %s913, 4
          %s925 = int_to_ptr.vmem [resolvable:$true] %s924
          %930 = dma.vmem_to_hbm [thread:$0]  %s925, 1024, %s923, %s910, 128, 128, 8
        $region44: #{tpu_custom_call.1} parent=31 // pred_fallthru
          _
      $region32: #{tpu_custom_call.1} parent=5 // pred_fallthru
        _
      %p931 = scmp.le.s32.totalorder 2, %s16
      // Predicated region
      $region45: #{tpu_custom_call.1} parent=5 // pred_check
        %p932 = pneg %p931
      $region46: #{tpu_custom_call.1} parent=5 // pred_check_branch
        %934 = sbr.rel (%p932) target = $region48
      $region47: #{tpu_custom_call.1} parent=5 // pred_region
        %s935 = ssub.s32 %s16, 2
        // Predicated region
        $region49: #{tpu_custom_call.1} parent=47 // pred_check
          %p936 = pneg %p113
        $region50: #{tpu_custom_call.1} parent=47 // pred_check_branch
          %938 = sbr.rel (%p936) target = $region52
        $region51: #{tpu_custom_call.1} parent=47 // pred_region
          %s939 = sand.u32 %s98, 1
          %s940 = scalar_lea.sflag [#allocation4], %s939
          %s941 = sand.u32 %s98, 1
          %s942 = smul.addr %s941, 64
          %s943 = scalar_lea.vmem [#allocation7], %s942
          %944 = dma.done %s940, 1024
        $region52: #{tpu_custom_call.1} parent=47 // pred_fallthru
          _
      $region48: #{tpu_custom_call.1} parent=5 // pred_fallthru
        _
    $region6: #{tpu_custom_call.1} parent=1 // loop_footer
      %s20 = sadd.s32 1, %s16
    $region7: #{tpu_custom_call.1} parent=1 // loop_footer_branch
      %15 = sbr.rel target = $region3
    $region8: #{tpu_custom_call.1} parent=1 // loop_exit
      _
    %945 = vsyncpa [#allocation3], 1
    %s946 = scalar_lea.sflag [#allocation3], 1
    %947 = vsyncpa %s946, 1
    %948 = vsyncpa [#allocation6], 1
    %949 = vsyncpa [#allocation4], 1
    %s950 = scalar_lea.sflag [#allocation4], 1
    %951 = vsyncpa %s950, 1

</llo_original>
